<compile_context>
chip_gen: v6e
topology: v6e:2x2x1
jax: 0.10.0
libtpu: 0.0.40
codegen_flags: <defaults>
</compile_context>

<pallas_src>
import functools

import jax
import jax.numpy as jnp
from jax.experimental import pallas as pl
from jax.experimental.pallas import tpu as pltpu

_NEG_BIG = -1e30  # "minus infinity" for padded logit columns (finite -> no inf-inf NaNs)


def _round_up(n, m):
    return ((n + m - 1) // m) * m


def _classifier_kernel(x_ref, w1_ref, b1_ref, w2_ref, b2_ref, o_ref):
    # x_ref : (TB, D_in)  bf16     w1_ref: (D_in, H)  bf16    b1_ref: (1, H)     f32
    # w2_ref: (H, D_out)  bf16     b2_ref: (1, D_out) f32     o_ref : (TB, D_out) f32

    # hidden = relu(X @ W1 + b1)   -- bf16 MXU matmul, f32 accumulation
    h = jnp.dot(x_ref[...], w1_ref[...], preferred_element_type=jnp.float32) + b1_ref[...]
    h = jnp.maximum(h, 0.0)

    # TODO(synk): nn.Dropout is identity at inference; a training-mode stochastic mask
    # (pltpu.prng_seed + pltpu.stateful_bernoulli) is intentionally not applied here.

    # logits = hidden @ W2 + b2   -- hidden re-cast to bf16 for the MXU, f32 accumulation
    logits = jnp.dot(h.astype(w2_ref.dtype), w2_ref[...],
                     preferred_element_type=jnp.float32) + b2_ref[...]

    # numerically-stable softmax over the lane-dense (padded) class dim
    m = jnp.max(logits, axis=-1, keepdims=True)
    e = jnp.exp(logits - m)
    denom = jnp.sum(e, axis=-1, keepdims=True)
    probs = e * pl.reciprocal(denom, approx=True)  # EUP vrcp, off the VALU path

    o_ref[...] = probs.astype(o_ref.dtype)


def _resident_spec(shape):
    """Full-array block with a constant index_map; single-buffered when supported."""
    index_map = lambda i: (0,) * len(shape)
    if hasattr(pl, "Buffered"):
        try:
            return pl.BlockSpec(shape, index_map, pipeline_mode=pl.Buffered(1))
        except TypeError:
            pass  # older jax without the pipeline_mode kwarg
    return pl.BlockSpec(shape, index_map)


@functools.partial(jax.jit, static_argnames=("tile_b",))
def classifier_forward(x, w1, b1, w2, b2, *, tile_b=None):
    """x: [B, D_in] f32; w1: [D_in, H]; b1: [1, H]; w2: [H, D_out]; b2: [1, D_out].

    Returns softmax probabilities [B, D_out] in float32.
    """
    B, D_in = x.shape
    H = w1.shape[1]
    D_out = w2.shape[1]

    # ---- batch-tile selection --------------------------------------------------------
    B_pad = _round_up(B, 8)
    if tile_b is None:
        tile_b = min(256, B_pad)
        # prefer >= 2 grid steps (pipelining + megacore) when the batch allows it
        if B_pad // tile_b < 2 and tile_b >= 16 and (tile_b // 2) % 8 == 0:
            tile_b //= 2
    assert tile_b % 8 == 0 or tile_b == B_pad, "tile_b must be a multiple of 8"
    B_pad = _round_up(B_pad, tile_b)

    # lane-dense feature dims
    D_in_pad = _round_up(D_in, 128)
    H_pad = _round_up(H, 128)
    D_out_pad = _round_up(D_out, 128)

    # ---- pad + cast inputs (bf16 activations / weights, f32 biases) -------------------
    x_p = jnp.pad(x, ((0, B_pad - B), (0, D_in_pad - D_in))).astype(jnp.bfloat16)
    w1_p = jnp.pad(w1, ((0, D_in_pad - D_in), (0, H_pad - H))).astype(jnp.bfloat16)
    b1_p = jnp.pad(b1.astype(jnp.float32), ((0, 0), (0, H_pad - H)))
    w2_p = jnp.pad(w2, ((0, H_pad - H), (0, D_out_pad - D_out))).astype(jnp.bfloat16)
    # padded logit columns get a huge negative bias so softmax gives them ~0 probability
    b2_p = jnp.pad(b2.astype(jnp.float32), ((0, 0), (0, D_out_pad - D_out)),
                   constant_values=_NEG_BIG)

    grid = (B_pad // tile_b,)

    # ---- VMEM budget / compiler params -------------------------------------------------
    weights_bytes = (D_in_pad * H_pad + H_pad * D_out_pad) * 2 + (H_pad + D_out_pad) * 4
    io_bytes = 2 * (tile_b * D_in_pad * 2 + tile_b * D_out_pad * 4)  # double-buffered tiles
    hidden_bytes = tile_b * H_pad * 4
    vmem_need = 2 * weights_bytes + io_bytes + 4 * hidden_bytes  # conservative estimate
    compiler_kwargs = dict(dimension_semantics=("parallel",))
    if vmem_need > (32 << 20):
        compiler_kwargs["vmem_limit_bytes"] = int(min(vmem_need * 5 // 4, 120 << 20))

    cost = pl.CostEstimate(
        flops=2 * B_pad * (D_in_pad * H_pad + H_pad * D_out_pad),
        transcendentals=B_pad * D_out_pad,
        bytes_accessed=(B_pad * D_in_pad * 2 + weights_bytes + B_pad * D_out_pad * 4),
    )

    out_padded = pl.pallas_call(
        _classifier_kernel,
        out_shape=jax.ShapeDtypeStruct((B_pad, D_out_pad), jnp.float32),
        grid_spec=pltpu.PrefetchScalarGridSpec(
            num_scalar_prefetch=0,
            grid=grid,
            in_specs=[
                # batch-tiled activations
                pl.BlockSpec((tile_b, D_in_pad), lambda i: (i, 0)),
                # resident weights / biases (constant block across the grid)
                _resident_spec((D_in_pad, H_pad)),
                _resident_spec((1, H_pad)),
                _resident_spec((H_pad, D_out_pad)),
                _resident_spec((1, D_out_pad)),
            ],
            out_specs=pl.BlockSpec((tile_b, D_out_pad), lambda i: (i, 0)),
        ),
        compiler_params=pltpu.CompilerParams(**compiler_kwargs),
        cost_estimate=cost,
    )(x_p, w1_p, b1_p, w2_p, b2_p)

    # strip batch / class padding outside the kernel
    return out_padded[:B, :D_out]


def init_params(key, input_dim, hidden_dim, output_dim):
    """Deterministic init mimicking nn.Linear defaults (uniform +/- 1/sqrt(fan_in))."""
    k1, k2, k3, k4 = jax.random.split(key, 4)
    bound1 = 1.0 / jnp.sqrt(jnp.float32(input_dim))
    bound2 = 1.0 / jnp.sqrt(jnp.float32(hidden_dim))
    w1 = jax.random.uniform(k1, (input_dim, hidden_dim), jnp.float32, -bound1, bound1)
    b1 = jax.random.uniform(k2, (1, hidden_dim), jnp.float32, -bound1, bound1)
    w2 = jax.random.uniform(k3, (hidden_dim, output_dim), jnp.float32, -bound2, bound2)
    b2 = jax.random.uniform(k4, (1, output_dim), jnp.float32, -bound2, bound2)
    return w1, b1, w2, b2


if __name__ == "__main__":
    # Small shapes consistent with the module's forward: X [batch, input_dim]
    batch, input_dim, hidden_dim, output_dim = 64, 32, 64, 16

    key = jax.random.PRNGKey(0)
    kx, kp = jax.random.split(key)
    x = jax.random.normal(kx, (batch, input_dim), dtype=jnp.float32)
    w1, b1, w2, b2 = init_params(kp, input_dim, hidden_dim, output_dim)

    out = classifier_forward(x, w1, b1, w2, b2)
    out = jax.block_until_ready(out)

    # pure-JAX reference with the same bf16 matmul precision as the kernel
    xb, w1b, w2b = x.astype(jnp.bfloat16), w1.astype(jnp.bfloat16), w2.astype(jnp.bfloat16)
    h_ref = jnp.maximum(jnp.dot(xb, w1b, preferred_element_type=jnp.float32) + b1, 0.0)
    logits_ref = jnp.dot(h_ref.astype(jnp.bfloat16), w2b,
                         preferred_element_type=jnp.float32) + b2
    ref = jax.nn.softmax(logits_ref, axis=-1)

    assert out.shape == (batch, output_dim)
    # tolerances cover the approx EUP reciprocal (~1e-4 rel) and accumulation order
    assert jnp.allclose(out, ref, atol=5e-3, rtol=5e-3), "mismatch vs reference"
    assert jnp.allclose(jnp.sum(out, axis=-1), 1.0, atol=5e-3), "rows must sum to ~1"

    print("KERNEL_OK")
</pallas_src>

<mosaic_0001>
module attributes {stable_mosaic.version = 11 : i64} {
  func.func @_classifier_kernel(%arg0: i32, %arg1: memref<32x128xbf16, #tpu.memory_space<vmem>>, %arg2: memref<128x128xbf16, #tpu.memory_space<vmem>>, %arg3: memref<1x128xf32, #tpu.memory_space<vmem>>, %arg4: memref<128x128xbf16, #tpu.memory_space<vmem>>, %arg5: memref<1x128xf32, #tpu.memory_space<vmem>>, %arg6: memref<32x128xf32, #tpu.memory_space<vmem>>) attributes {dimension_semantics = [#tpu.dimension_semantics<parallel>], iteration_bounds = array<i64: 2>, scalar_prefetch = 0 : i64, scratch_operands = 0 : i64, tpu.core_type = #tpu.core_type<tc>, window_params = [{transform_indices = @transform_0, window_bounds = array<i64: 32, 128>}, {pipeline_mode = #tpu.pipeline_mode<synchronous>, transform_indices = @transform_1, window_bounds = array<i64: 128, 128>}, {pipeline_mode = #tpu.pipeline_mode<synchronous>, transform_indices = @transform_2, window_bounds = array<i64: 1, 128>}, {pipeline_mode = #tpu.pipeline_mode<synchronous>, transform_indices = @transform_3, window_bounds = array<i64: 128, 128>}, {pipeline_mode = #tpu.pipeline_mode<synchronous>, transform_indices = @transform_4, window_bounds = array<i64: 1, 128>}, {transform_indices = @transform_5, window_bounds = array<i64: 32, 128>}]} {
    %c0 = arith.constant 0 : index
    %c0_0 = arith.constant 0 : index
    %0 = vector.load %arg1[%c0, %c0_0] : memref<32x128xbf16, #tpu.memory_space<vmem>>, vector<32x128xbf16>
    %c0_1 = arith.constant 0 : index
    %c0_2 = arith.constant 0 : index
    %1 = vector.load %arg2[%c0_1, %c0_2] : memref<128x128xbf16, #tpu.memory_space<vmem>>, vector<128x128xbf16>
    %cst = arith.constant dense<0.000000e+00> : vector<32x128xf32>
    %2 = tpu.matmul %0, %1, %cst {dimension_numbers = #tpu.dot_dimension_numbers<[1], [0], [0], [1], [0, 0, 1, 1], [], []>} : vector<32x128xbf16>, vector<128x128xbf16>, vector<32x128xf32> -> vector<32x128xf32>
    %c0_3 = arith.constant 0 : index
    %c0_4 = arith.constant 0 : index
    %3 = vector.load %arg3[%c0_3, %c0_4] : memref<1x128xf32, #tpu.memory_space<vmem>>, vector<1x128xf32>
    %4 = vector.broadcast %3 : vector<1x128xf32> to vector<32x128xf32>
    %5 = arith.addf %2, %4 : vector<32x128xf32>
    %cst_5 = arith.constant 0.000000e+00 : f32
    %6 = vector.broadcast %cst_5 : f32 to vector<32x128xf32>
    %7 = arith.maximumf %5, %6 : vector<32x128xf32>
    %8 = arith.truncf %7 : vector<32x128xf32> to vector<32x128xbf16>
    %c0_6 = arith.constant 0 : index
    %c0_7 = arith.constant 0 : index
    %9 = vector.load %arg4[%c0_6, %c0_7] : memref<128x128xbf16, #tpu.memory_space<vmem>>, vector<128x128xbf16>
    %cst_8 = arith.constant dense<0.000000e+00> : vector<32x128xf32>
    %10 = tpu.matmul %8, %9, %cst_8 {dimension_numbers = #tpu.dot_dimension_numbers<[1], [0], [0], [1], [0, 0, 1, 1], [], []>} : vector<32x128xbf16>, vector<128x128xbf16>, vector<32x128xf32> -> vector<32x128xf32>
    %c0_9 = arith.constant 0 : index
    %c0_10 = arith.constant 0 : index
    %11 = vector.load %arg5[%c0_9, %c0_10] : memref<1x128xf32, #tpu.memory_space<vmem>>, vector<1x128xf32>
    %12 = vector.broadcast %11 : vector<1x128xf32> to vector<32x128xf32>
    %13 = arith.addf %10, %12 : vector<32x128xf32>
    %cst_11 = arith.constant dense<0xFF800000> : vector<32xf32>
    %14 = vector.multi_reduction <maximumf>, %13, %cst_11 [1] : vector<32x128xf32> to vector<32xf32>
    %15 = vector.shape_cast %14 : vector<32xf32> to vector<32x1xf32>
    %16 = vector.broadcast %15 : vector<32x1xf32> to vector<32x128xf32>
    %17 = arith.subf %13, %16 : vector<32x128xf32>
    %18 = math.exp %17 : vector<32x128xf32>
    %cst_12 = arith.constant dense<0.000000e+00> : vector<32xf32>
    %19 = vector.multi_reduction <add>, %18, %cst_12 [1] : vector<32x128xf32> to vector<32xf32>
    %20 = vector.shape_cast %19 : vector<32xf32> to vector<32x1xf32>
    %21 = tpu.reciprocal %20 {approx = true} : vector<32x1xf32> -> vector<32x1xf32>
    %22 = vector.broadcast %21 : vector<32x1xf32> to vector<32x128xf32>
    %23 = arith.mulf %18, %22 : vector<32x128xf32>
    %c0_13 = arith.constant 0 : index
    %c0_14 = arith.constant 0 : index
    %24 = vector.load %arg6[%c0_13, %c0_14] : memref<32x128xf32, #tpu.memory_space<vmem>>, vector<32x128xf32>
    tpu.vector_store %arg6[%c0_13, %c0_14], %23 {strides = array<i32>} : memref<32x128xf32, #tpu.memory_space<vmem>>, vector<32x128xf32>,
    return
  }
  func.func @transform_0(%arg0: i32) -> (i32, i32) {
    %c0_i32 = arith.constant 0 : i32
    %c0_i32_0 = arith.constant 0 : i32
    return %arg0, %c0_i32 : i32, i32
  }
  func.func @transform_1(%arg0: i32) -> (i32, i32) {
    %c0_i32 = arith.constant 0 : i32
    %c0_i32_0 = arith.constant 0 : i32
    %c0_i32_1 = arith.constant 0 : i32
    return %c0_i32, %c0_i32_0 : i32, i32
  }
  func.func @transform_2(%arg0: i32) -> (i32, i32) {
    %c0_i32 = arith.constant 0 : i32
    %c0_i32_0 = arith.constant 0 : i32
    %c0_i32_1 = arith.constant 0 : i32
    return %c0_i32, %c0_i32_0 : i32, i32
  }
  func.func @transform_3(%arg0: i32) -> (i32, i32) {
    %c0_i32 = arith.constant 0 : i32
    %c0_i32_0 = arith.constant 0 : i32
    %c0_i32_1 = arith.constant 0 : i32
    return %c0_i32, %c0_i32_0 : i32, i32
  }
  func.func @transform_4(%arg0: i32) -> (i32, i32) {
    %c0_i32 = arith.constant 0 : i32
    %c0_i32_0 = arith.constant 0 : i32
    %c0_i32_1 = arith.constant 0 : i32
    return %c0_i32, %c0_i32_0 : i32, i32
  }
  func.func @transform_5(%arg0: i32) -> (i32, i32) {
    %c0_i32 = arith.constant 0 : i32
    %c0_i32_0 = arith.constant 0 : i32
    return %arg0, %c0_i32 : i32, i32
  }
}

</mosaic_0001>

<llo_original>
// kernel: classifier_forward.1
$region0: #{classifier_forward.1}
  #allocation0 [shape = 'u32[]', space=smem, size = 0x4, offset = 0x4, fixed_abs, tag = 'smem constant byte address 0x4 - core index']
  #allocation1 [shape = 'u32[144,128]{1,0:T(1,128)}', space=vmem, size = 0x12000, scoped, tag = 'internal scratch']
  %s0 = inlined_call_operand.vmem [shape: bf16[64,128], index: 0, kind: input, shape index: {}]
  %s1 = inlined_call_operand.vmem [shape: bf16[128,128], index: 1, kind: input, shape index: {}]
  %s2 = inlined_call_operand.vmem [shape: f32[1,128], index: 2, kind: input, shape index: {}]
  %s3 = inlined_call_operand.vmem [shape: bf16[128,128], index: 3, kind: input, shape index: {}]
  %s4 = inlined_call_operand.vmem [shape: f32[1,128], index: 4, kind: input, shape index: {}]
  %s5 = inlined_call_operand.vmem [shape: f32[64,128], index: 5, kind: output, shape index: {}]
  %s6 = sld [smem:[#allocation0]]
  $region53: #{classifier_forward.1} parent=0
    _
  %s8 = ssub.s32 1, %s6
  %s9 = scalar_select 0, %s8, %s6
  loop: start=0, step=1, limit=4
  $region2: #{classifier_forward.1} parent=0 // loop_pre_header
    _
  $region3: #{classifier_forward.1} parent=0 // loop_header
    %s11 = sphi 0, %s15
    %p12 = scmp.ge.s32.totalorder %s11, 4
    %s21 = sphi 0, %s23
    %s24 = sphi 0, %s21
    %s25 = sphi 0, %s24
    %s41 = sphi 0, %s25
    %s45 = sphi 0, %s45
    %s47 = sphi 0, %s45
    %s48 = sphi 0, %s47
    %s62 = sphi 0, %s48
    %s66 = sphi 0, %s66
    %s68 = sphi 0, %s66
    %s69 = sphi 0, %s68
    %s83 = sphi 0, %s69
    %s87 = sphi 0, %s87
    %s89 = sphi 0, %s87
    %s90 = sphi 0, %s89
    %s104 = sphi 0, %s90
    %s108 = sphi 0, %s108
    %s110 = sphi 0, %s108
    %s111 = sphi 0, %s110
    %s125 = sphi 0, %s111
    %s131 = sphi 0, %s133
    %s134 = sphi 0, %s131
    %s135 = sphi 0, %s134
    %s151 = sphi 0, %s135
  $region4: #{classifier_forward.1} parent=0 // loop_header_branch
    %14 = sbr.rel (%p12) target = $region8
  $region5: #{classifier_forward.1} parent=0 // loop_body
    %s16 = ssub.s32 %s11, 1
    %s17 = ssub.s32 %s11, 2
    %s18 = sadd.s32 %s11, 1
    %s19 = ssub.s32 %s11, %s18
    %p20 = scmp.eq.s32.totalorder %s19, 0
    %s22 = sadd.s32 %s21, 1
    %s23 = scalar_select %p20, %s21, %s22
    %p26 = pneg %p20
    %p27 = scmp.eq.s32.totalorder %s11, 1
    %p28 = por %p26, %p27
    %p29 = scmp.ne.s32.totalorder %s21, %s24
    %p30 = scmp.eq.s32.totalorder %s11, 0
    %p31 = por %p29, %p30
    %p32 = scmp.ne.s32.totalorder %s21, %s24
    %p33 = scmp.eq.s32.totalorder %s16, 1
    %p34 = por %p32, %p33
    %p35 = scmp.ne.s32.totalorder %s24, %s25
    %p36 = scmp.eq.s32.totalorder %s16, 0
    %p37 = por %p35, %p36
    %p38 = scmp.ne.s32.totalorder %s24, %s25
    %p39 = scmp.eq.s32.totalorder %s17, 1
    %p40 = por %p38, %p39
    %p42 = scmp.ne.s32.totalorder %s25, %s41
    %p43 = scmp.eq.s32.totalorder %s17, 0
    %p44 = por %p42, %p43
    %s46 = sadd.s32 %s45, 1
    %p49 = scmp.eq.s32.totalorder %s11, 1
    %p50 = scmp.ne.s32.totalorder %s45, %s47
    %p51 = scmp.eq.s32.totalorder %s11, 0
    %p52 = por %p50, %p51
    %p53 = scmp.ne.s32.totalorder %s45, %s47
    %p54 = scmp.eq.s32.totalorder %s16, 1
    %p55 = por %p53, %p54
    %p56 = scmp.ne.s32.totalorder %s47, %s48
    %p57 = scmp.eq.s32.totalorder %s16, 0
    %p58 = por %p56, %p57
    %p59 = scmp.ne.s32.totalorder %s47, %s48
    %p60 = scmp.eq.s32.totalorder %s17, 1
    %p61 = por %p59, %p60
    %p63 = scmp.ne.s32.totalorder %s48, %s62
    %p64 = scmp.eq.s32.totalorder %s17, 0
    %p65 = por %p63, %p64
    %s67 = sadd.s32 %s66, 1
    %p70 = scmp.eq.s32.totalorder %s11, 1
    %p71 = scmp.ne.s32.totalorder %s66, %s68
    %p72 = scmp.eq.s32.totalorder %s11, 0
    %p73 = por %p71, %p72
    %p74 = scmp.ne.s32.totalorder %s66, %s68
    %p75 = scmp.eq.s32.totalorder %s16, 1
    %p76 = por %p74, %p75
    %p77 = scmp.ne.s32.totalorder %s68, %s69
    %p78 = scmp.eq.s32.totalorder %s16, 0
    %p79 = por %p77, %p78
    %p80 = scmp.ne.s32.totalorder %s68, %s69
    %p81 = scmp.eq.s32.totalorder %s17, 1
    %p82 = por %p80, %p81
    %p84 = scmp.ne.s32.totalorder %s69, %s83
    %p85 = scmp.eq.s32.totalorder %s17, 0
    %p86 = por %p84, %p85
    %s88 = sadd.s32 %s87, 1
    %p91 = scmp.eq.s32.totalorder %s11, 1
    %p92 = scmp.ne.s32.totalorder %s87, %s89
    %p93 = scmp.eq.s32.totalorder %s11, 0
    %p94 = por %p92, %p93
    %p95 = scmp.ne.s32.totalorder %s87, %s89
    %p96 = scmp.eq.s32.totalorder %s16, 1
    %p97 = por %p95, %p96
    %p98 = scmp.ne.s32.totalorder %s89, %s90
    %p99 = scmp.eq.s32.totalorder %s16, 0
    %p100 = por %p98, %p99
    %p101 = scmp.ne.s32.totalorder %s89, %s90
    %p102 = scmp.eq.s32.totalorder %s17, 1
    %p103 = por %p101, %p102
    %p105 = scmp.ne.s32.totalorder %s90, %s104
    %p106 = scmp.eq.s32.totalorder %s17, 0
    %p107 = por %p105, %p106
    %s109 = sadd.s32 %s108, 1
    %p112 = scmp.eq.s32.totalorder %s11, 1
    %p113 = scmp.ne.s32.totalorder %s108, %s110
    %p114 = scmp.eq.s32.totalorder %s11, 0
    %p115 = por %p113, %p114
    %p116 = scmp.ne.s32.totalorder %s108, %s110
    %p117 = scmp.eq.s32.totalorder %s16, 1
    %p118 = por %p116, %p117
    %p119 = scmp.ne.s32.totalorder %s110, %s111
    %p120 = scmp.eq.s32.totalorder %s16, 0
    %p121 = por %p119, %p120
    %p122 = scmp.ne.s32.totalorder %s110, %s111
    %p123 = scmp.eq.s32.totalorder %s17, 1
    %p124 = por %p122, %p123
    %p126 = scmp.ne.s32.totalorder %s111, %s125
    %p127 = scmp.eq.s32.totalorder %s17, 0
    %p128 = por %p126, %p127
    %s129 = ssub.s32 %s11, %s18
    %p130 = scmp.eq.s32.totalorder %s129, 0
    %s132 = sadd.s32 %s131, 1
    %s133 = scalar_select %p130, %s131, %s132
    %p136 = pneg %p130
    %p137 = scmp.eq.s32.totalorder %s11, 1
    %p138 = por %p136, %p137
    %p139 = scmp.ne.s32.totalorder %s131, %s134
    %p140 = scmp.eq.s32.totalorder %s11, 0
    %p141 = por %p139, %p140
    %p142 = scmp.ne.s32.totalorder %s131, %s134
    %p143 = scmp.eq.s32.totalorder %s16, 1
    %p144 = por %p142, %p143
    %p145 = scmp.ne.s32.totalorder %s134, %s135
    %p146 = scmp.eq.s32.totalorder %s16, 0
    %p147 = por %p145, %p146
    %p148 = scmp.ne.s32.totalorder %s134, %s135
    %p149 = scmp.eq.s32.totalorder %s17, 1
    %p150 = por %p148, %p149
    %p152 = scmp.ne.s32.totalorder %s135, %s151
    %p153 = scmp.eq.s32.totalorder %s17, 0
    %p154 = por %p152, %p153
    %p155 = scmp.le.s32.totalorder 1, %s11
    %p156 = scmp.lt.s32.totalorder %s11, 3
    %p157 = pnand %p155, %p156
    %p158 = pneg %p157
    // Predicated region
    $region9: #{classifier_forward.1} parent=5 // pred_check
      _
    $region10: #{classifier_forward.1} parent=5 // pred_check_branch
      %160 = sbr.rel (%p157) target = $region12
    $region11: #{classifier_forward.1} parent=5 // pred_region
      %s161 = ssub.s32 %s11, 1
      // Predicated region
      $region13: #{classifier_forward.1} parent=11 // pred_check
        %p162 = pneg %p58
      $region14: #{classifier_forward.1} parent=11 // pred_check_branch
        %164 = sbr.rel (%p162) target = $region16
      $region15: #{classifier_forward.1} parent=11 // pred_region
        _
      $region16: #{classifier_forward.1} parent=11 // pred_fallthru
        _
      // Predicated region
      $region17: #{classifier_forward.1} parent=11 // pred_check
        %p165 = pneg %p79
      $region18: #{classifier_forward.1} parent=11 // pred_check_branch
        %167 = sbr.rel (%p165) target = $region20
      $region19: #{classifier_forward.1} parent=11 // pred_region
        _
      $region20: #{classifier_forward.1} parent=11 // pred_fallthru
        _
      // Predicated region
      $region21: #{classifier_forward.1} parent=11 // pred_check
        %p168 = pneg %p100
      $region22: #{classifier_forward.1} parent=11 // pred_check_branch
        %170 = sbr.rel (%p168) target = $region24
      $region23: #{classifier_forward.1} parent=11 // pred_region
        _
      $region24: #{classifier_forward.1} parent=11 // pred_fallthru
        _
      // Predicated region
      $region25: #{classifier_forward.1} parent=11 // pred_check
        %p171 = pneg %p121
      $region26: #{classifier_forward.1} parent=11 // pred_check_branch
        %173 = sbr.rel (%p171) target = $region28
      $region27: #{classifier_forward.1} parent=11 // pred_region
        _
      $region28: #{classifier_forward.1} parent=11 // pred_fallthru
        _
    $region12: #{classifier_forward.1} parent=5 // pred_fallthru
      _
    %p174 = scmp.lt.s32.totalorder %s11, 2
    // Predicated region
    $region29: #{classifier_forward.1} parent=5 // pred_check
      %p175 = pneg %p174
    $region30: #{classifier_forward.1} parent=5 // pred_check_branch
      %177 = sbr.rel (%p175) target = $region32
    $region31: #{classifier_forward.1} parent=5 // pred_region
      // Predicated region
      $region33: #{classifier_forward.1} parent=31 // pred_check
        %p178 = pneg %p31
      $region34: #{classifier_forward.1} parent=31 // pred_check_branch
        %180 = sbr.rel (%p178) target = $region36
      $region35: #{classifier_forward.1} parent=31 // pred_region
        %s181 = smul.u32 4, %s11
        %p182 = scmp.lt.s32.totalorder %s181, 7
        %s183 = scalar_select %p182, %s181, 7
        %s184 = smul.addr %s183, 4
        %s185 = scalar_lea.vmem %s0, %s184
        %s186 = smul.u32 4, %s11
      $region36: #{classifier_forward.1} parent=31 // pred_fallthru
        _
    $region32: #{classifier_forward.1} parent=5 // pred_fallthru
      _
    %p187 = scmp.le.s32.totalorder 1, %s11
    %p188 = scmp.lt.s32.totalorder %s11, 3
    %p189 = pnand %p187, %p188
    %p190 = pneg %p189
    // Predicated region
    $region37: #{classifier_forward.1} parent=5 // pred_check
      _
    $region38: #{classifier_forward.1} parent=5 // pred_check_branch
      %192 = sbr.rel (%p189) target = $region40
    $region39: #{classifier_forward.1} parent=5 // pred_region
      %s193 = ssub.s32 %s11, 1
      %s194 = smul.u32 4, %s16
      %p195 = scmp.lt.s32.totalorder %s194, 7
      %s196 = scalar_select %p195, %s194, 7
      %s197 = smul.addr %s196, 4
      %s198 = scalar_lea.vmem %s0, %s197
      %p199 = pneg %p37
      %p200 = pneg %p34
      %p201 = pneg %p58
      %p202 = pneg %p55
      %p203 = pneg %p79
      %p204 = pneg %p76
      %p205 = pneg %p100
      %p206 = pneg %p97
      %p207 = pneg %p121
      %p208 = pneg %p118
      %p209 = pneg %p147
      %p210 = pneg %p144
      %s211 = smul.u32 4, %s16
      %p212 = scmp.lt.s32.totalorder %s211, 7
      %s213 = scalar_select %p212, %s211, 7
      %s214 = smul.addr %s213, 8
      %s215 = scalar_lea.vmem %s5, %s214
      %s216 = smul.u32 4, %s16
      %p217 = scmp.lt.s32.totalorder %s216, 7
      %s218 = scalar_select %p217, %s216, 7
      %s219 = smul.addr %s218, 4
      %s220 = scalar_lea.vmem %s0, %s219
      %s221 = smul.u32 4, %s16
      %s222 = smul.u32 4, %s16
      %p223 = scmp.lt.s32.totalorder %s222, 7
      %s224 = scalar_select %p223, %s222, 7
      %s225 = smul.addr %s224, 8
      %s226 = scalar_lea.vmem %s5, %s225
      %s227 = smul.u32 4, %s16
      %v229 = vld [vmem:[%s220] sm:$0xf]
      %v230 = vld [vmem:[%s220 + $0x4] sm:$0xf]
      %v231 = vld [vmem:[%s220 + $0x8] sm:$0xf]
      %v232 = vld [vmem:[%s220 + $0xc] sm:$0xf]
      %v233 = vld [vmem:[%s1] sm:$0xf]
      %v234 = vld [vmem:[%s1 + $0x4] sm:$0xf]
      %v235 = vld [vmem:[%s1 + $0x8] sm:$0xf]
      %v236 = vld [vmem:[%s1 + $0xc] sm:$0xf]
      %v237 = vld [vmem:[%s1 + $0x10] sm:$0xf]
      %v238 = vld [vmem:[%s1 + $0x14] sm:$0xf]
      %v239 = vld [vmem:[%s1 + $0x18] sm:$0xf]
      %v240 = vld [vmem:[%s1 + $0x1c] sm:$0xf]
      %v241 = vld [vmem:[%s1 + $0x20] sm:$0xf]
      %v242 = vld [vmem:[%s1 + $0x24] sm:$0xf]
      %v243 = vld [vmem:[%s1 + $0x28] sm:$0xf]
      %v244 = vld [vmem:[%s1 + $0x2c] sm:$0xf]
      %v245 = vld [vmem:[%s1 + $0x30] sm:$0xf]
      %v246 = vld [vmem:[%s1 + $0x34] sm:$0xf]
      %v247 = vld [vmem:[%s1 + $0x38] sm:$0xf]
      %v248 = vld [vmem:[%s1 + $0x3c] sm:$0xf]
      %v249 = vld [vmem:[%s2] sm:$0x1]
      %v251 = vlaneseq
      %v252 = vshrl.u32 %v251, 7
      %v253 = vsub.s32 0, %v252
      %v254 = vrot.slane %v249, %v253
      %v260 = vunpack.c.l.b16 %v229
      %v261 = vunpack.c.l.b16 %v230
      %v262 = vunpack.c.l.b16 %v231
      %v263 = vunpack.c.l.b16 %v232
      %v264 = vpack.c.b16 %v261, %v260
      %v265 = vpack.c.b16 %v263, %v262
      %v284 = vunpack.c.l.b16 %v233
      %v285 = vunpack.c.l.b16 %v234
      %v286 = vunpack.c.l.b16 %v235
      %v287 = vunpack.c.l.b16 %v236
      %v288 = vunpack.c.l.b16 %v237
      %v289 = vunpack.c.l.b16 %v238
      %v290 = vunpack.c.l.b16 %v239
      %v291 = vunpack.c.l.b16 %v240
      %v292 = vunpack.c.l.b16 %v241
      %v293 = vunpack.c.l.b16 %v242
      %v294 = vunpack.c.l.b16 %v243
      %v295 = vunpack.c.l.b16 %v244
      %v296 = vunpack.c.l.b16 %v245
      %v297 = vunpack.c.l.b16 %v246
      %v298 = vunpack.c.l.b16 %v247
      %v299 = vunpack.c.l.b16 %v248
      %v300 = vpack.c.b16 %v285, %v284
      %v301 = vpack.c.b16 %v287, %v286
      %v302 = vpack.c.b16 %v289, %v288
      %v303 = vpack.c.b16 %v291, %v290
      %v304 = vpack.c.b16 %v293, %v292
      %v305 = vpack.c.b16 %v295, %v294
      %v306 = vpack.c.b16 %v297, %v296
      %v307 = vpack.c.b16 %v299, %v298
      %316 = vmatprep.subr.bf16.mxu0 0
      %317 = vmatpush1.bf16.msra.mxu0 %v307
      %318 = vmatprep.subr.bf16.mxu0 0
      %319 = vmatpush1.bf16.msra.mxu0 %v306
      %320 = vmatprep.subr.bf16.mxu0 0
      %321 = vmatpush1.bf16.msra.mxu0 %v305
      %322 = vmatprep.subr.bf16.mxu0 0
      %323 = vmatpush1.bf16.msra.mxu0 %v304
      %324 = vmatprep.subr.bf16.mxu0 0
      %325 = vmatpush1.bf16.msra.mxu0 %v303
      %326 = vmatprep.subr.bf16.mxu0 0
      %327 = vmatpush1.bf16.msra.mxu0 %v302
      %328 = vmatprep.subr.bf16.mxu0 0
      %329 = vmatpush1.bf16.msra.mxu0 %v301
      %330 = vmatprep.subr.bf16.mxu0 0
      %331 = vmatpush1.bf16.msra.mxu0 %v300
      %332 = vmatprep.subr.bf16.mxu0 0
      %333 = vmatpush2.bf16.msra.mxu0 0
      %334 = vmatprep.subr.bf16.mxu0 0
      %335 = vmatpush2.bf16.msra.mxu0 0
      %336 = vmatprep.subr.bf16.mxu0 0
      %337 = vmatpush2.bf16.msra.mxu0 0
      %338 = vmatprep.subr.bf16.mxu0 0
      %339 = vmatpush2.bf16.msra.mxu0 0
      %340 = vmatprep.subr.bf16.mxu0 0
      %341 = vmatpush2.bf16.msra.mxu0 0
      %342 = vmatprep.subr.bf16.mxu0 0
      %343 = vmatpush2.bf16.msra.mxu0 0
      %344 = vmatprep.subr.bf16.mxu0 0
      %345 = vmatpush2.bf16.msra.mxu0 0
      %346 = vmatprep.subr.bf16.mxu0 0
      %347 = vmatpush2.bf16.msra.mxu0 0
      %348 = vmatprep.mubr.bf16.mxu0 0
      %349 = vmatmul.mubr.bf16.gmra.mxu0 %v264
      %v350 = vpop.f32.mrf.mxu0
      %v351 = vadd.f32 %v254, %v350
      %v352 = vpop.f32.mrf.mxu0
      %v353 = vpop.f32.mrf.mxu0
      %v354 = vadd.f32 %v254, %v353
      %v355 = vpop.f32.mrf.mxu0
      %356 = vmatprep.mubr.bf16.mxu0 0
      %357 = vmatmul.mubr.bf16.gmra.mxu0 %v265
      %v358 = vpop.f32.mrf.mxu0
      %v359 = vadd.f32 %v254, %v358
      %v360 = vpop.f32.mrf.mxu0
      %v361 = vpop.f32.mrf.mxu0
      %v362 = vadd.f32 %v254, %v361
      %v363 = vpop.f32.mrf.mxu0
      %364 = vdwg.mxu0
      %v365 = vmax.f32 %v351, 0.0
      %v366 = vmax.f32 %v354, 0.0
      %v367 = vmax.f32 %v359, 0.0
      %v368 = vmax.f32 %v362, 0.0
      %v369 = vpack.c.bf16 %v366, %v365
      %v370 = vpack.c.bf16 %v368, %v367
      %v371 = vld [vmem:[%s3] sm:$0xf]
      %v372 = vld [vmem:[%s3 + $0x4] sm:$0xf]
      %v373 = vld [vmem:[%s3 + $0x8] sm:$0xf]
      %v374 = vld [vmem:[%s3 + $0xc] sm:$0xf]
      %v375 = vld [vmem:[%s3 + $0x10] sm:$0xf]
      %v376 = vld [vmem:[%s3 + $0x14] sm:$0xf]
      %v377 = vld [vmem:[%s3 + $0x18] sm:$0xf]
      %v378 = vld [vmem:[%s3 + $0x1c] sm:$0xf]
      %v379 = vld [vmem:[%s3 + $0x20] sm:$0xf]
      %v380 = vld [vmem:[%s3 + $0x24] sm:$0xf]
      %v381 = vld [vmem:[%s3 + $0x28] sm:$0xf]
      %v382 = vld [vmem:[%s3 + $0x2c] sm:$0xf]
      %v383 = vld [vmem:[%s3 + $0x30] sm:$0xf]
      %v384 = vld [vmem:[%s3 + $0x34] sm:$0xf]
      %v385 = vld [vmem:[%s3 + $0x38] sm:$0xf]
      %v386 = vld [vmem:[%s3 + $0x3c] sm:$0xf]
      %v387 = vld [vmem:[%s4] sm:$0x1]
      %v389 = vlaneseq
      %v390 = vshrl.u32 %v389, 7
      %v391 = vsub.s32 0, %v390
      %v392 = vrot.slane %v387, %v391
      %v410 = vunpack.c.l.b16 %v371
      %v411 = vunpack.c.l.b16 %v372
      %v412 = vunpack.c.l.b16 %v373
      %v413 = vunpack.c.l.b16 %v374
      %v414 = vunpack.c.l.b16 %v375
      %v415 = vunpack.c.l.b16 %v376
      %v416 = vunpack.c.l.b16 %v377
      %v417 = vunpack.c.l.b16 %v378
      %v418 = vunpack.c.l.b16 %v379
      %v419 = vunpack.c.l.b16 %v380
      %v420 = vunpack.c.l.b16 %v381
      %v421 = vunpack.c.l.b16 %v382
      %v422 = vunpack.c.l.b16 %v383
      %v423 = vunpack.c.l.b16 %v384
      %v424 = vunpack.c.l.b16 %v385
      %v425 = vunpack.c.l.b16 %v386
      %v426 = vpack.c.b16 %v411, %v410
      %v427 = vpack.c.b16 %v413, %v412
      %v428 = vpack.c.b16 %v415, %v414
      %v429 = vpack.c.b16 %v417, %v416
      %v430 = vpack.c.b16 %v419, %v418
      %v431 = vpack.c.b16 %v421, %v420
      %v432 = vpack.c.b16 %v423, %v422
      %v433 = vpack.c.b16 %v425, %v424
      %442 = vmatprep.subr.bf16.mxu0 0
      %443 = vmatpush1.bf16.msra.mxu0 %v433
      %444 = vmatprep.subr.bf16.mxu0 0
      %445 = vmatpush1.bf16.msra.mxu0 %v432
      %446 = vmatprep.subr.bf16.mxu0 0
      %447 = vmatpush1.bf16.msra.mxu0 %v431
      %448 = vmatprep.subr.bf16.mxu0 0
      %449 = vmatpush1.bf16.msra.mxu0 %v430
      %450 = vmatprep.subr.bf16.mxu0 0
      %451 = vmatpush1.bf16.msra.mxu0 %v429
      %452 = vmatprep.subr.bf16.mxu0 0
      %453 = vmatpush1.bf16.msra.mxu0 %v428
      %454 = vmatprep.subr.bf16.mxu0 0
      %455 = vmatpush1.bf16.msra.mxu0 %v427
      %456 = vmatprep.subr.bf16.mxu0 0
      %457 = vmatpush1.bf16.msra.mxu0 %v426
      %458 = vmatprep.subr.bf16.mxu0 0
      %459 = vmatpush2.bf16.msra.mxu0 0
      %460 = vmatprep.subr.bf16.mxu0 0
      %461 = vmatpush2.bf16.msra.mxu0 0
      %462 = vmatprep.subr.bf16.mxu0 0
      %463 = vmatpush2.bf16.msra.mxu0 0
      %464 = vmatprep.subr.bf16.mxu0 0
      %465 = vmatpush2.bf16.msra.mxu0 0
      %466 = vmatprep.subr.bf16.mxu0 0
      %467 = vmatpush2.bf16.msra.mxu0 0
      %468 = vmatprep.subr.bf16.mxu0 0
      %469 = vmatpush2.bf16.msra.mxu0 0
      %470 = vmatprep.subr.bf16.mxu0 0
      %471 = vmatpush2.bf16.msra.mxu0 0
      %472 = vmatprep.subr.bf16.mxu0 0
      %473 = vmatpush2.bf16.msra.mxu0 0
      %474 = vmatprep.mubr.bf16.mxu0 0
      %475 = vmatmul.mubr.bf16.gmra.mxu0 %v369
      %v476 = vpop.f32.mrf.mxu0
      %v477 = vadd.f32 %v392, %v476
      %v478 = vpop.f32.mrf.mxu0
      %v479 = vpop.f32.mrf.mxu0
      %v480 = vadd.f32 %v392, %v479
      %v481 = vpop.f32.mrf.mxu0
      %482 = vmatprep.mubr.bf16.mxu0 0
      %483 = vmatmul.mubr.bf16.gmra.mxu0 %v370
      %v484 = vpop.f32.mrf.mxu0
      %v485 = vadd.f32 %v392, %v484
      %v486 = vpop.f32.mrf.mxu0
      %v487 = vpop.f32.mrf.mxu0
      %v488 = vadd.f32 %v392, %v487
      %v489 = vpop.f32.mrf.mxu0
      %490 = vdwg.mxu0
      %491 = vmax.xlane.f32.xlu0 %v477
      %v492 = vpop.xlane.xlu0 %491
      %493 = vmax.xlane.f32.xlu0 %v480
      %v494 = vpop.xlane.xlu0 %493
      %495 = vmax.xlane.f32.xlu0 %v485
      %v496 = vpop.xlane.xlu0 %495
      %497 = vmax.xlane.f32.xlu0 %v488
      %v498 = vpop.xlane.xlu0 %497
      %v499 = vsub.f32 %v477, %v492
      %v500 = vsub.f32 %v480, %v494
      %v501 = vsub.f32 %v485, %v496
      %v502 = vsub.f32 %v488, %v498
      %v503 = vmul.f32 %v499, 1.442695
      %v504 = vpow.pop %v503
      %v505 = vmul.f32 %v500, 1.442695
      %v506 = vpow.pop %v505
      %v507 = vmul.f32 %v501, 1.442695
      %v508 = vpow.pop %v507
      %v509 = vmul.f32 %v502, 1.442695
      %v510 = vpow.pop %v509
      %511 = vadd.xlane.f32.xlu0 %v504
      %v512 = vpop.xlane.xlu0 %511
      %513 = vadd.xlane.f32.xlu0 %v506
      %v514 = vpop.xlane.xlu0 %513
      %515 = vadd.xlane.f32.xlu0 %v508
      %v516 = vpop.xlane.xlu0 %515
      %517 = vadd.xlane.f32.xlu0 %v510
      %v518 = vpop.xlane.xlu0 %517
      %v519 = vrcp.pop %v512
      %v520 = vrcp.pop %v514
      %v521 = vrcp.pop %v516
      %v522 = vrcp.pop %v518
      %v523 = vmul.f32 %v504, %v519
      %v524 = vmul.f32 %v506, %v520
      %v525 = vmul.f32 %v508, %v521
      %v526 = vmul.f32 %v510, %v522
      %527 = vst [vmem:[%s226] sm:$0xff] %v523
      %528 = vst [vmem:[%s226 + $0x8] sm:$0xff] %v524
      %529 = vst [vmem:[%s226 + $0x10] sm:$0xff] %v525
      %530 = vst [vmem:[%s226 + $0x18] sm:$0xff] %v526
      %s531 = smul.u32 4, %s16
      %p532 = scmp.lt.s32.totalorder %s531, 7
      %s533 = scalar_select %p532, %s531, 7
      %s534 = smul.addr %s533, 8
      %s535 = scalar_lea.vmem %s5, %s534
      // Predicated region
      $region41: #{classifier_forward.1} parent=39 // pred_check
        %p536 = pneg %p144
      $region42: #{classifier_forward.1} parent=39 // pred_check_branch
        %538 = sbr.rel (%p536) target = $region44
      $region43: #{classifier_forward.1} parent=39 // pred_region
        %s539 = smul.u32 4, %s16
      $region44: #{classifier_forward.1} parent=39 // pred_fallthru
        _
    $region40: #{classifier_forward.1} parent=5 // pred_fallthru
      _
    %p540 = scmp.le.s32.totalorder 2, %s11
    // Predicated region
    $region45: #{classifier_forward.1} parent=5 // pred_check
      %p541 = pneg %p540
    $region46: #{classifier_forward.1} parent=5 // pred_check_branch
      %543 = sbr.rel (%p541) target = $region48
    $region47: #{classifier_forward.1} parent=5 // pred_region
      %s544 = ssub.s32 %s11, 2
      // Predicated region
      $region49: #{classifier_forward.1} parent=47 // pred_check
        %p545 = pneg %p150
      $region50: #{classifier_forward.1} parent=47 // pred_check_branch
        %547 = sbr.rel (%p545) target = $region52
      $region51: #{classifier_forward.1} parent=47 // pred_region
        %s548 = smul.u32 4, %s17
        %p549 = scmp.lt.s32.totalorder %s548, 7
        %s550 = scalar_select %p549, %s548, 7
        %s551 = smul.addr %s550, 8
        %s552 = scalar_lea.vmem %s5, %s551
      $region52: #{classifier_forward.1} parent=47 // pred_fallthru
        _
    $region48: #{classifier_forward.1} parent=5 // pred_fallthru
      _
  $region6: #{classifier_forward.1} parent=0 // loop_footer
    %s15 = sadd.s32 1, %s11
  $region7: #{classifier_forward.1} parent=0 // loop_footer_branch
    %10 = sbr.rel target = $region3
  $region8: #{classifier_forward.1} parent=0 // loop_exit
    _

</llo_original>
